<compile_context>
chip_gen: v5e
topology: v5e:2x2
jax: 0.10.0
libtpu: 0.0.40
codegen_flags: <defaults>
</compile_context>

<pallas_src>
import math

import jax
import jax.numpy as jnp
from jax.experimental import pallas as pl
from jax.experimental.pallas import tpu as pltpu

_EPS = 1e-5  # torch.nn.InstanceNorm1d default


def _softpool_kernel(x_ref, w_ref, s_ref, o_ref):
    # x_ref: (Cb, L)      Bt flattened (batch, channel) rows, lane-dense along L
    # w_ref: (2*Cb, Cb)   block-diagonal merged linear weight (h rows, then a rows)
    # s_ref: (Cb, 1)      InstanceNorm gamma replicated per batch row
    # o_ref: (Cb, 1)      pooled output for this block's rows
    x = x_ref[...].astype(jnp.float32)           # no-op when input is already f32
    cb, length = x.shape

    # One MXU push: block-diagonal weight produces both halves at once.
    y = jax.lax.dot_general(w_ref[...], x, (((1,), (0,)), ((), ())),
                            preferred_element_type=jnp.float32)     # (2*Cb, L)
    h = y[:cb]                                   # tile-aligned row split (Cb % 8 == 0)
    a = y[cb:]

    # InstanceNorm1d statistics over L (biased variance), single pass.
    inv_l = 1.0 / length
    mean = jnp.sum(a, axis=-1, keepdims=True) * inv_l               # (Cb, 1)
    var = jnp.sum(a * a, axis=-1, keepdims=True) * inv_l - mean * mean
    var = jnp.maximum(var, 0.0)                  # guard E[a^2]-mean^2 cancellation
    scale = s_ref[...] * jax.lax.rsqrt(var + _EPS)                  # gamma folded in
    logits = (a - mean) * scale                  # beta dropped: softmax-invariant

    # Softmax over L fused with the weighted reduction:
    #   out = sum_L(h * exp(logits - max)) / sum_L(exp(logits - max))
    m = jnp.max(logits, axis=-1, keepdims=True)                     # (Cb, 1)
    e = jnp.exp(logits - m)                                         # (Cb, L)
    num = jnp.sum(h * e, axis=-1, keepdims=True)                    # (Cb, 1)
    den = jnp.sum(e, axis=-1, keepdims=True)                        # (Cb, 1)
    o_ref[...] = (num / den).astype(o_ref.dtype)


def _pick_batch_tile(B, C):
    """Smallest Bt dividing B with Bt*C a multiple of 8 (f32 sublane fill)."""
    for bt in range(1, B + 1):
        if B % bt == 0 and (bt * C) % 8 == 0:
            return bt
    return B  # single full block: block dims == array dims is always legal


def softpool_forward(x, weight, gamma, beta):
    """SoftPool forward.  x: (B, C, *spatial); weight: (2C, C); gamma/beta: (C,).

    `beta` is accepted for interface parity but never used: softmax over L is
    invariant to a per-channel additive constant, so beta cannot change the
    SoftPool output.
    """
    del beta
    B, C = x.shape[0], x.shape[1]
    L = math.prod(x.shape[2:])

    # Metadata-only reshape: (B, C, *spatial) -> (B*C, L).  No casts, no copies.
    xf = x.reshape(B * C, L)

    Bt = _pick_batch_tile(B, C)
    Cb = Bt * C
    n_steps = B // Bt

    # Merge both halves of the linear into one block-diagonal weight so a single
    # dot produces h rows [0, Cb) and a rows [Cb, 2*Cb) for the whole slab.
    w = jnp.asarray(weight, jnp.float32)
    w_h, w_a = w[:C, :], w[C:, :]
    eye = jnp.eye(Bt, dtype=jnp.float32)
    w_big = jnp.concatenate([jnp.kron(eye, w_h), jnp.kron(eye, w_a)], axis=0)  # (2Cb, Cb)

    gamma_rep = jnp.tile(jnp.asarray(gamma, jnp.float32), Bt).reshape(Cb, 1)

    # VMEM sizing: double-buffered x block + ~a dozen (Cb, L) f32 temporaries
    # + resident weights; clamp <= 48 MiB so v7x (64 MiB/TC) keeps headroom.
    x_block_bytes = Cb * L * jnp.dtype(xf.dtype).itemsize
    need = 2 * x_block_bytes + 12 * Cb * L * 4 + 4 * (2 * Cb * Cb + 2 * Cb) + (1 << 20)
    vmem_limit = int(min(48 * 1024 * 1024, max(16 * 1024 * 1024, 2 * need)))

    cost = pl.CostEstimate(
        flops=2 * n_steps * (2 * Cb) * Cb * L + 10 * B * C * L,
        transcendentals=B * C * L,
        bytes_accessed=int(xf.size) * jnp.dtype(xf.dtype).itemsize
        + 4 * (int(w_big.size) + Cb + B * C),
    )

    out = pl.pallas_call(
        _softpool_kernel,
        out_shape=jax.ShapeDtypeStruct((B * C, 1), jnp.float32),
        grid_spec=pltpu.PrefetchScalarGridSpec(
            num_scalar_prefetch=0,
            grid=(n_steps,),
            in_specs=[
                pl.BlockSpec((Cb, L), lambda i: (i, 0)),        # x slab, streamed
                pl.BlockSpec((2 * Cb, Cb), lambda i: (0, 0)),   # merged weight (resident)
                pl.BlockSpec((Cb, 1), lambda i: (0, 0)),        # gamma (resident)
            ],
            out_specs=pl.BlockSpec((Cb, 1), lambda i: (i, 0)),
        ),
        compiler_params=pltpu.CompilerParams(
            dimension_semantics=("parallel",),   # independent batch slabs
            vmem_limit_bytes=vmem_limit,
        ),
        cost_estimate=cost,
    )(xf, w_big, gamma_rep)

    # (B*C, 1) -> (B, C) is metadata only.  The pooled output is only B*C floats
    # per call; a lane-dense (Bt, C) store would still be < 128 lanes (masked)
    # and would cost an extra sublane->lane relayout in-kernel, so the tiny
    # column writeback is kept.
    return out.reshape(B, C)


def softpool_ref(x, weight, gamma, beta, eps=_EPS):
    """Pure-JAX reference with identical semantics (torch SoftPool.forward)."""
    B, C = x.shape[0], x.shape[1]
    L = math.prod(x.shape[2:])
    xf = x.reshape(B, C, L)
    y = jnp.einsum("oc,bcl->bol", weight, xf)            # (B, 2C, L)
    h, a = y[:, :C, :], y[:, C:, :]
    mean = jnp.mean(a, axis=-1, keepdims=True)
    var = jnp.mean((a - mean) ** 2, axis=-1, keepdims=True)
    a_n = (a - mean) * jax.lax.rsqrt(var + eps)
    a_n = a_n * gamma[None, :, None] + beta[None, :, None]
    p = jax.nn.softmax(a_n, axis=-1)
    return jnp.sum(h * p, axis=-1)                        # (B, C)


if __name__ == "__main__":
    # Small shapes consistent with the module: NCHW input, ncha channels.
    batch, ncha, H, W = 2, 4, 16, 16

    key = jax.random.PRNGKey(0)
    kx, kw, kg, kb = jax.random.split(key, 4)

    x = jax.random.normal(kx, (batch, ncha, H, W), dtype=jnp.float32)

    # Linear(ncha, 2*ncha, bias=False): uniform(-1/sqrt(nin), 1/sqrt(nin)) init.
    bound = 1.0 / (ncha ** 0.5)
    weight = jax.random.uniform(kw, (2 * ncha, ncha), minval=-bound, maxval=bound,
                                dtype=jnp.float32)
    # InstanceNorm1d(ncha, affine=True) params (randomized to exercise the affine path).
    gamma = jax.random.uniform(kg, (ncha,), minval=0.5, maxval=1.5, dtype=jnp.float32)
    beta = jax.random.uniform(kb, (ncha,), minval=-0.5, maxval=0.5, dtype=jnp.float32)

    out = softpool_forward(x, weight, gamma, beta)
    out = jax.block_until_ready(out)

    ref = softpool_ref(x, weight, gamma, beta)
    assert out.shape == (batch, ncha), out.shape
    assert jnp.allclose(out, ref, atol=1e-4, rtol=1e-4), (
        float(jnp.max(jnp.abs(out - ref))))

    print("KERNEL_OK")
</pallas_src>

<mosaic_0001>
module attributes {stable_mosaic.version = 11 : i64} {
  func.func @_softpool_kernel(%arg0: i32, %arg1: memref<8x256xf32, #tpu.memory_space<vmem>>, %arg2: memref<16x8xf32, #tpu.memory_space<vmem>>, %arg3: memref<8x1xf32, #tpu.memory_space<vmem>>, %arg4: memref<8x1xf32, #tpu.memory_space<vmem>>) attributes {dimension_semantics = [#tpu.dimension_semantics<parallel>], iteration_bounds = array<i64: 1>, scalar_prefetch = 0 : i64, scratch_operands = 0 : i64, tpu.core_type = #tpu.core_type<tc>, window_params = [{transform_indices = @transform_0, window_bounds = array<i64: 8, 256>}, {pipeline_mode = #tpu.pipeline_mode<synchronous>, transform_indices = @transform_1, window_bounds = array<i64: 16, 8>}, {pipeline_mode = #tpu.pipeline_mode<synchronous>, transform_indices = @transform_2, window_bounds = array<i64: 8, 1>}, {transform_indices = @transform_3, window_bounds = array<i64: 8, 1>}]} {
    %c0 = arith.constant 0 : index
    %c0_0 = arith.constant 0 : index
    %0 = vector.load %arg1[%c0, %c0_0] : memref<8x256xf32, #tpu.memory_space<vmem>>, vector<8x256xf32>
    %c0_1 = arith.constant 0 : index
    %c0_2 = arith.constant 0 : index
    %1 = vector.load %arg2[%c0_1, %c0_2] : memref<16x8xf32, #tpu.memory_space<vmem>>, vector<16x8xf32>
    %cst = arith.constant dense<0.000000e+00> : vector<16x256xf32>
    %2 = tpu.matmul %1, %0, %cst {dimension_numbers = #tpu.dot_dimension_numbers<[1], [0], [0], [1], [0, 0, 1, 1], [], []>} : vector<16x8xf32>, vector<8x256xf32>, vector<16x256xf32> -> vector<16x256xf32>
    %3 = vector.extract_strided_slice %2 {offsets = [0, 0], sizes = [8, 256], strides = [1, 1]} : vector<16x256xf32> to vector<8x256xf32>
    %4 = vector.extract_strided_slice %2 {offsets = [8, 0], sizes = [8, 256], strides = [1, 1]} : vector<16x256xf32> to vector<8x256xf32>
    %cst_3 = arith.constant dense<0.000000e+00> : vector<8xf32>
    %5 = vector.multi_reduction <add>, %4, %cst_3 [1] : vector<8x256xf32> to vector<8xf32>
    %6 = vector.shape_cast %5 : vector<8xf32> to vector<8x1xf32>
    %cst_4 = arith.constant 3.906250e-03 : f32
    %7 = vector.broadcast %cst_4 : f32 to vector<8x1xf32>
    %8 = arith.mulf %6, %7 : vector<8x1xf32>
    %9 = arith.mulf %4, %4 : vector<8x256xf32>
    %cst_5 = arith.constant dense<0.000000e+00> : vector<8xf32>
    %10 = vector.multi_reduction <add>, %9, %cst_5 [1] : vector<8x256xf32> to vector<8xf32>
    %11 = vector.shape_cast %10 : vector<8xf32> to vector<8x1xf32>
    %cst_6 = arith.constant 3.906250e-03 : f32
    %12 = vector.broadcast %cst_6 : f32 to vector<8x1xf32>
    %13 = arith.mulf %11, %12 : vector<8x1xf32>
    %14 = arith.mulf %8, %8 : vector<8x1xf32>
    %15 = arith.subf %13, %14 : vector<8x1xf32>
    %cst_7 = arith.constant 0.000000e+00 : f32
    %16 = vector.broadcast %cst_7 : f32 to vector<8x1xf32>
    %17 = arith.maximumf %15, %16 : vector<8x1xf32>
    %c0_8 = arith.constant 0 : index
    %c0_9 = arith.constant 0 : index
    %18 = vector.load %arg3[%c0_8, %c0_9] : memref<8x1xf32, #tpu.memory_space<vmem>>, vector<8x1xf32>
    %cst_10 = arith.constant 9.99999974E-6 : f32
    %19 = vector.broadcast %cst_10 : f32 to vector<8x1xf32>
    %20 = arith.addf %17, %19 : vector<8x1xf32>
    %21 = math.rsqrt %20 : vector<8x1xf32>
    %22 = arith.mulf %18, %21 : vector<8x1xf32>
    %23 = vector.broadcast %8 : vector<8x1xf32> to vector<8x256xf32>
    %24 = arith.subf %4, %23 : vector<8x256xf32>
    %25 = vector.broadcast %22 : vector<8x1xf32> to vector<8x256xf32>
    %26 = arith.mulf %24, %25 : vector<8x256xf32>
    %cst_11 = arith.constant dense<0xFF800000> : vector<8xf32>
    %27 = vector.multi_reduction <maximumf>, %26, %cst_11 [1] : vector<8x256xf32> to vector<8xf32>
    %28 = vector.shape_cast %27 : vector<8xf32> to vector<8x1xf32>
    %29 = vector.broadcast %28 : vector<8x1xf32> to vector<8x256xf32>
    %30 = arith.subf %26, %29 : vector<8x256xf32>
    %31 = math.exp %30 : vector<8x256xf32>
    %32 = arith.mulf %3, %31 : vector<8x256xf32>
    %cst_12 = arith.constant dense<0.000000e+00> : vector<8xf32>
    %33 = vector.multi_reduction <add>, %32, %cst_12 [1] : vector<8x256xf32> to vector<8xf32>
    %34 = vector.shape_cast %33 : vector<8xf32> to vector<8x1xf32>
    %cst_13 = arith.constant dense<0.000000e+00> : vector<8xf32>
    %35 = vector.multi_reduction <add>, %31, %cst_13 [1] : vector<8x256xf32> to vector<8xf32>
    %36 = vector.shape_cast %35 : vector<8xf32> to vector<8x1xf32>
    %37 = arith.divf %34, %36 : vector<8x1xf32>
    %c0_14 = arith.constant 0 : index
    %c0_15 = arith.constant 0 : index
    %38 = vector.load %arg4[%c0_14, %c0_15] : memref<8x1xf32, #tpu.memory_space<vmem>>, vector<8x1xf32>
    tpu.vector_store %arg4[%c0_14, %c0_15], %37 {strides = array<i32>} : memref<8x1xf32, #tpu.memory_space<vmem>>, vector<8x1xf32>,
    return
  }
  func.func @transform_0(%arg0: i32) -> (i32, i32) {
    %c0_i32 = arith.constant 0 : i32
    %c0_i32_0 = arith.constant 0 : i32
    return %arg0, %c0_i32 : i32, i32
  }
  func.func @transform_1(%arg0: i32) -> (i32, i32) {
    %c0_i32 = arith.constant 0 : i32
    %c0_i32_0 = arith.constant 0 : i32
    %c0_i32_1 = arith.constant 0 : i32
    return %c0_i32, %c0_i32_0 : i32, i32
  }
  func.func @transform_2(%arg0: i32) -> (i32, i32) {
    %c0_i32 = arith.constant 0 : i32
    %c0_i32_0 = arith.constant 0 : i32
    %c0_i32_1 = arith.constant 0 : i32
    return %c0_i32, %c0_i32_0 : i32, i32
  }
  func.func @transform_3(%arg0: i32) -> (i32, i32) {
    %c0_i32 = arith.constant 0 : i32
    %c0_i32_0 = arith.constant 0 : i32
    return %arg0, %c0_i32 : i32, i32
  }
}

</mosaic_0001>

<llo_original>
// kernel: tpu_custom_call.1
$region0: #{tpu_custom_call.1}
  #allocation0 [shape = 'u32[]', space=smem, size = 0x4, offset = 0x4, fixed_abs, tag = 'smem constant byte address 0x4 - core index']
  #allocation1 [shape = 'u32[72,128]{1,0:T(1,128)}', space=vmem, size = 0x9000, scoped, tag = 'internal scratch']
  %s0 = inlined_call_operand.vmem [shape: f32[8,256], index: 0, kind: input, shape index: {}]
  %s1 = inlined_call_operand.vmem [shape: f32[16,8], index: 1, kind: input, shape index: {}]
  %s2 = inlined_call_operand.vmem [shape: f32[8,1], index: 2, kind: input, shape index: {}]
  %s3 = inlined_call_operand.vmem [shape: f32[8,1], index: 3, kind: output, shape index: {}]
  %s4 = sld [smem:[#allocation0]]
  $region22: #{tpu_custom_call.1} parent=0
    _
  %s6 = ssub.s32 1, %s4
  %s7 = scalar_select 0, %s6, %s4
  // Predicated region
  $region2: #{tpu_custom_call.1} parent=0 // pred_check
    _
  $region3: #{tpu_custom_call.1} parent=0 // pred_check_branch
    %9 = sbr.rel (0) target = $region5
  $region4: #{tpu_custom_call.1} parent=0 // pred_region
    _
  $region5: #{tpu_custom_call.1} parent=0 // pred_fallthru
    _
  // Predicated region
  $region6: #{tpu_custom_call.1} parent=0 // pred_check
    _
  $region7: #{tpu_custom_call.1} parent=0 // pred_check_branch
    %11 = sbr.rel (0) target = $region9
  $region8: #{tpu_custom_call.1} parent=0 // pred_region
    _
  $region9: #{tpu_custom_call.1} parent=0 // pred_fallthru
    _
  // Predicated region
  $region10: #{tpu_custom_call.1} parent=0 // pred_check
    _
  $region11: #{tpu_custom_call.1} parent=0 // pred_check_branch
    %13 = sbr.rel (0) target = $region13
  $region12: #{tpu_custom_call.1} parent=0 // pred_region
    _
  $region13: #{tpu_custom_call.1} parent=0 // pred_fallthru
    _
  %v14 = vld [vmem:[%s0] sm:$0xff]
  %v15 = vld [vmem:[%s0 + $0x8] sm:$0xff]
  %v16 = vld [vmem:[%s1] sm:$0xff]
  %v17 = vld [vmem:[%s1 + $0x8] sm:$0xff]
  %vm18 = vcmask 64512
  %v20 = vsel %vm18, %v16, 0
  %v23 = vsel %vm18, %v17, 0
  %25 = vmatpush.msra.mxu0 0.0
  %26 = vmatpush.msra.mxu0 0.0
  %27 = vmatpush.msra.mxu0 0.0
  %28 = vmatpush.msra.mxu0 0.0
  %29 = vmatpush.msra.mxu0 0.0
  %30 = vmatpush.msra.mxu0 0.0
  %31 = vmatpush.msra.mxu0 0.0
  %32 = vmatpush.msra.mxu0 0.0
  %33 = vmatpush.msra.mxu0 0.0
  %34 = vmatpush.msra.mxu0 0.0
  %35 = vmatpush.msra.mxu0 0.0
  %36 = vmatpush.msra.mxu0 0.0
  %37 = vmatpush.msra.mxu0 0.0
  %38 = vmatpush.msra.mxu0 0.0
  %39 = vmatpush.msra.mxu0 0.0
  %40 = vmatpush.msra.mxu0 %v14
  %41 = vmatmul.f32.gmra.mxu0 %v20
  %v42 = vpop.f32.mrf.mxu0
  %v43 = vadd.f32 0.0, %v42
  %44 = vmatmul.f32.gmra.mxu0 %v23
  %v45 = vpop.f32.mrf.mxu0
  %v46 = vadd.f32 0.0, %v45
  %47 = vdwg.mxu0
  %48 = vmatpush.msra.mxu0 0.0
  %49 = vmatpush.msra.mxu0 0.0
  %50 = vmatpush.msra.mxu0 0.0
  %51 = vmatpush.msra.mxu0 0.0
  %52 = vmatpush.msra.mxu0 0.0
  %53 = vmatpush.msra.mxu0 0.0
  %54 = vmatpush.msra.mxu0 0.0
  %55 = vmatpush.msra.mxu0 0.0
  %56 = vmatpush.msra.mxu0 0.0
  %57 = vmatpush.msra.mxu0 0.0
  %58 = vmatpush.msra.mxu0 0.0
  %59 = vmatpush.msra.mxu0 0.0
  %60 = vmatpush.msra.mxu0 0.0
  %61 = vmatpush.msra.mxu0 0.0
  %62 = vmatpush.msra.mxu0 0.0
  %63 = vmatpush.msra.mxu0 %v15
  %64 = vmatmul.f32.gmra.mxu0 %v20
  %v65 = vpop.f32.mrf.mxu0
  %v66 = vadd.f32 0.0, %v65
  %67 = vmatmul.f32.gmra.mxu0 %v23
  %v68 = vpop.f32.mrf.mxu0
  %v69 = vadd.f32 0.0, %v68
  %70 = vdwg.mxu0
  %v71 = vadd.f32 %v46, %v69
  %72 = vadd.xlane.f32.xlu0 %v71
  %v73 = vpop.xlane.xlu0 %72
  %v74 = vmul.f32 %v73, 0.00390625
  %v75 = vmul.f32 %v46, %v46
  %v76 = vmul.f32 %v69, %v69
  %v77 = vadd.f32 %v75, %v76
  %78 = vadd.xlane.f32.xlu0 %v77
  %v79 = vpop.xlane.xlu0 %78
  %v80 = vmul.f32 %v79, 0.00390625
  %v81 = vmul.f32 %v74, %v74
  %v82 = vsub.f32 %v80, %v81
  %v83 = vmax.f32 %v82, 0.0
  %v84 = vld [vmem:[%s2] sm:$0xff]
  %v85 = vadd.f32 %v83, 1e-05
  %v86 = vrsqrt.pop %v85
  %v87 = vmul.f32 %v86, %v85
  %v88 = vmul.f32 %v87, %v86
  %v89 = vmul.f32 0.5, %v88
  %v90 = vsub.f32 1.5, %v89
  %v91 = vmul.f32 %v86, %v90
  %vm92 = vweird.f32 %v85
  %vm93 = vweird.f32 %v86
  %vm94 = vmor %vm92, %vm93
  %v95 = vsel %vm94, %v86, %v91
  %v96 = vmul.f32 %v84, %v95
  %v97 = vsub.f32 %v46, %v74
  %v98 = vsub.f32 %v69, %v74
  %100 = vset.pattern.permute.xlu0 0
  %101 = vperm.xlu0 %100, %v96
  %v102 = vpop.permute.xlu0 %101
  %v104 = vmul.f32 %v97, %v102
  %v105 = vmul.f32 %v98, %v102
  %v106 = vmax.f32 %v104, %v105
  %107 = vmax.xlane.f32.xlu0 %v106
  %v108 = vpop.xlane.xlu0 %107
  %v109 = vsub.f32 %v104, %v108
  %v110 = vsub.f32 %v105, %v108
  %v111 = vmul.f32 %v109, 1.442695
  %v112 = vpow.pop %v111
  %v113 = vmul.f32 %v110, 1.442695
  %v114 = vpow.pop %v113
  %v115 = vmul.f32 %v43, %v112
  %v116 = vmul.f32 %v66, %v114
  %v117 = vadd.f32 %v115, %v116
  %118 = vadd.xlane.f32.xlu0 %v117
  %v119 = vpop.xlane.xlu0 %118
  %v120 = vadd.f32 %v112, %v114
  %121 = vadd.xlane.f32.xlu0 %v120
  %v122 = vpop.xlane.xlu0 %121
  %v123 = vrcp.pop %v122
  %v124 = vmul.f32 %v122, %v123
  %v125 = vsub.f32 1.0, %v124
  %v126 = vmul.f32 %v123, %v125
  %v127 = vadd.f32 %v123, %v126
  %vm128 = vweird.f32 %v122
  %vm129 = vweird.f32 %v123
  %vm130 = vmor %vm128, %vm129
  %v131 = vsel %vm130, %v123, %v127
  %v132 = vand.u32 2147483647, %v122
  %vm133 = vcmp.eq.f32.partialorder %v132, 8.507059e+37
  %v134 = vand.u32 %v122, 2147483648
  %v135 = vor.u32 1.1754944e-38, %v134
  %v136 = vsel %vm133, %v135, %v131
  %v137 = vmul.f32 %v119, %v136
  %vm138 = vcmask 7168
  %139 = vst.msk [vmem:[%s3] sm:$0xff] %vm138, %v137
  // Predicated region
  $region14: #{tpu_custom_call.1} parent=0 // pred_check
    _
  $region15: #{tpu_custom_call.1} parent=0 // pred_check_branch
    %141 = sbr.rel (0) target = $region17
  $region16: #{tpu_custom_call.1} parent=0 // pred_region
    _
  $region17: #{tpu_custom_call.1} parent=0 // pred_fallthru
    _
  // Predicated region
  $region18: #{tpu_custom_call.1} parent=0 // pred_check
    _
  $region19: #{tpu_custom_call.1} parent=0 // pred_check_branch
    %143 = sbr.rel (0) target = $region21
  $region20: #{tpu_custom_call.1} parent=0 // pred_region
    _
  $region21: #{tpu_custom_call.1} parent=0 // pred_fallthru
    _

</llo_original>
